<compile_context>
chip_gen: v5e
topology: v5e:2x2
jax: 0.10.0
libtpu: 0.0.40
codegen_flags: <defaults>
</compile_context>

<pallas_src>
import functools

import jax
import jax.numpy as jnp
from jax.experimental import pallas as pl
from jax.experimental.pallas import tpu as pltpu


def _round_up(x, m):
    return (x + m - 1) // m * m


def _cdiv(a, b):
    return -(-a // b)


def _gauss_finer_f32(z, c2):
    # exp(-(scale*omega_f)^2 * (z*(|z|+1))^2), constants pre-folded into c2.
    w = z * (jnp.abs(z) + 1.0)
    return jnp.exp(-c2 * (w * w))


def _stack_kernel(x_ref, w1_ref, b1_ref, w2_ref, b2_ref, o_ref, *,
                  num_layers, c2, matmul_dtype):
    # Feature-major tile: (F, tn) -- F on sublanes, points N on lanes.
    cur = x_ref[...].astype(jnp.float32)          # layer input / residual carry
    for l in range(num_layers):                   # static unroll; L is small
        # first_linear: h = W1 @ cur + b1   (column view of cur @ W1^T + b1)
        h = jnp.dot(w1_ref[l], cur.astype(matmul_dtype),
                    preferred_element_type=jnp.float32) + b1_ref[l]
        a = _gauss_finer_f32(h, c2)
        # last_linear + residual: y = W2 @ a + b2 + cur
        y = (jnp.dot(w2_ref[l], a.astype(matmul_dtype),
                     preferred_element_type=jnp.float32)
             + b2_ref[l] + cur)
        cur = _gauss_finer_f32(y, c2)
    o_ref[...] = cur.astype(o_ref.dtype)


def prepare_stack_params(layers, matmul_dtype=jnp.bfloat16):
    """Stack per-layer PyTorch-layout params ONCE (not per call).

    `layers` is a sequence of (w1, b1, w2, b2) with weights in
    (out_features, in_features) layout -- exactly what the feature-major kernel
    consumes (W @ x), so no transpose ever happens.  Weights -> (L,F,F) bf16,
    biases -> (L,F,1) f32."""
    w1 = jnp.stack([jnp.asarray(p[0], matmul_dtype) for p in layers])
    b1 = jnp.stack([jnp.asarray(p[1], jnp.float32).reshape(-1, 1) for p in layers])
    w2 = jnp.stack([jnp.asarray(p[2], matmul_dtype) for p in layers])
    b2 = jnp.stack([jnp.asarray(p[3], jnp.float32).reshape(-1, 1) for p in layers])
    return w1, b1, w2, b2


def _choose_tile_n(n, tile_n_max):
    """Pick the lane-axis tile.  Multiples of 128 only; one block when N fits;
    otherwise an even block count so v7x's 2 TCs stay balanced."""
    tile_n_max = max(128, (tile_n_max // 128) * 128)   # clamp to lane multiple
    n128 = _round_up(n, 128)
    if n128 <= tile_n_max:
        return n128                                    # single block, grid = 1
    tn = tile_n_max
    blocks = _cdiv(n, tn)
    if blocks > 1 and blocks % 2 == 1:
        blocks += 1
        tn = max(128, _round_up(_cdiv(n128, blocks), 128))
    return tn


def gaussian_finer_residual_stack_t(x_t, stacked_params, *, scale=30.0,
                                    omega_f=2.5, tile_n=8192):
    """Fused forward of L consecutive GaussianFinerResidualLayer's.

    x_t is (F, N) feature-major (points on lanes).  All L layers' weights stay
    VMEM resident; inter-layer activations never round-trip HBM.  Use L=1 for a
    single module forward."""
    w1, b1, w2, b2 = stacked_params
    L, F, F2 = w1.shape
    assert F == F2 and w2.shape == (L, F, F), \
        "residual connection requires in_features == out_features"
    assert x_t.shape[0] == F
    N = x_t.shape[1]

    tn = _choose_tile_n(N, tile_n)
    grid = (_cdiv(N, tn),)                 # ragged edge handled by Pallas
    c2 = float(scale * omega_f) ** 2
    kernel = functools.partial(_stack_kernel, num_layers=L, c2=c2,
                               matmul_dtype=w1.dtype)

    return pl.pallas_call(
        kernel,
        out_shape=jax.ShapeDtypeStruct((F, N), x_t.dtype),
        grid_spec=pltpu.PrefetchScalarGridSpec(
            num_scalar_prefetch=0,
            grid=grid,
            in_specs=[
                pl.BlockSpec((F, tn), lambda i: (0, i)),        # x tile (streamed, lane-dense)
                pl.BlockSpec((L, F, F), lambda i: (0, 0, 0)),   # W1 stack (VMEM resident)
                pl.BlockSpec((L, F, 1), lambda i: (0, 0, 0)),   # b1 stack
                pl.BlockSpec((L, F, F), lambda i: (0, 0, 0)),   # W2 stack (VMEM resident)
                pl.BlockSpec((L, F, 1), lambda i: (0, 0, 0)),   # b2 stack
            ],
            out_specs=pl.BlockSpec((F, tn), lambda i: (0, i)),
        ),
        compiler_params=pltpu.CompilerParams(
            dimension_semantics=("parallel",),
            vmem_limit_bytes=48 * 1024 * 1024,   # below v7x's 64 MiB physical
        ),
    )(x_t, w1, b1, w2, b2)


def gaussian_finer_residual_layer(x, w1, b1, w2, b2, *, scale=30.0, omega_f=2.5,
                                  tile_n=8192, matmul_dtype=jnp.bfloat16):
    """Module-compatible entry: x is (N, F) row-major, weights in PyTorch
    (out_features, in_features) layout.  Transposes only at the boundary; for
    real INR stacks call gaussian_finer_residual_stack_t directly on (F, N)
    data with prepare_stack_params done once."""
    params = prepare_stack_params([(w1, b1, w2, b2)], matmul_dtype)
    out_t = gaussian_finer_residual_stack_t(
        x.T, params, scale=scale, omega_f=omega_f, tile_n=tile_n)
    return out_t.T.astype(x.dtype)


def _gaussian_finer_init(key, fan_in, fan_out, omega_f, k, first=False):
    """Deterministic stand-in for Initializer.gaussian_finer_init:
    W ~ U(-b, b), b = 1/fan_in (first) or sqrt(6/fan_in)/omega_f (hidden);
    bias ~ U(-k, k) (FINER bias-k init)."""
    kw, kb = jax.random.split(key)
    bound = (1.0 / fan_in) if first else (6.0 / fan_in) ** 0.5 / omega_f
    w = jax.random.uniform(kw, (fan_out, fan_in), jnp.float32, -bound, bound)
    b = jax.random.uniform(kb, (fan_out,), jnp.float32, -float(k), float(k))
    return w, b


def _reference_layer(x, w1, b1, w2, b2, scale, omega_f, matmul_dtype):
    """Pure-JAX single-layer reference with the same matmul precision."""
    c2 = float(scale * omega_f) ** 2
    h = jnp.dot(x.astype(matmul_dtype), jnp.asarray(w1, matmul_dtype).T,
                preferred_element_type=jnp.float32) + b1
    a = _gauss_finer_f32(h, c2)
    y = jnp.dot(a.astype(matmul_dtype), jnp.asarray(w2, matmul_dtype).T,
                preferred_element_type=jnp.float32) + b2 + x
    return _gauss_finer_f32(y, c2)


if __name__ == "__main__":
    # Small INR-style shapes: N coordinate samples, F = in_features = out_features.
    # N is deliberately not a multiple of 128 to exercise the ragged-edge path.
    N, F, L = 300, 32, 3
    scale, omega_f, first_k, hidden_k = 30.0, 2.5, 10, 10

    key = jax.random.PRNGKey(0)
    keys = jax.random.split(key, 1 + 2 * L)
    kx, klayers = keys[0], keys[1:]

    x = jax.random.uniform(kx, (N, F), jnp.float32, -1.0, 1.0)
    layers = []
    for l in range(L):
        w1, b1 = _gaussian_finer_init(klayers[2 * l], F, F, omega_f,
                                      first_k, first=(l == 0))
        w2, b2 = _gaussian_finer_init(klayers[2 * l + 1], F, F, omega_f,
                                      hidden_k, first=False)
        layers.append((w1, b1, w2, b2))

    # 1) Single layer == the original module forward (row-major wrapper).
    w1, b1, w2, b2 = layers[0]
    out1 = gaussian_finer_residual_layer(
        x, w1, b1, w2, b2, scale=scale, omega_f=omega_f)
    out1 = jax.block_until_ready(out1)
    ref1 = _reference_layer(x, w1, b1, w2, b2, scale, omega_f, jnp.bfloat16)
    assert out1.shape == (N, F)
    assert jnp.allclose(out1, ref1, atol=2e-3, rtol=2e-3), \
        "single-layer kernel mismatch vs JAX reference"

    # 2) Fused L-layer stack (headline optimization), feature-major layout.
    stacked = prepare_stack_params(layers)
    out_stack = gaussian_finer_residual_stack_t(
        x.T, stacked, scale=scale, omega_f=omega_f)
    out_stack = jax.block_until_ready(out_stack)
    assert out_stack.shape == (F, N)

    # Fused kernel must agree with running the same kernel one layer at a time.
    chained = x.T
    for lp in layers:
        chained = gaussian_finer_residual_stack_t(
            chained, prepare_stack_params([lp]), scale=scale, omega_f=omega_f)
    chained = jax.block_until_ready(chained)
    assert jnp.allclose(out_stack, chained, atol=1e-3, rtol=1e-3), \
        "fused stack mismatch vs layer-by-layer kernel"

    print("KERNEL_OK")
</pallas_src>

<mosaic_0001>
module attributes {stable_mosaic.version = 11 : i64} {
  func.func @_stack_kernel(%arg0: i32, %arg1: memref<32x384xf32, #tpu.memory_space<vmem>>, %arg2: memref<1x32x32xbf16, #tpu.memory_space<vmem>>, %arg3: memref<1x32x1xf32, #tpu.memory_space<vmem>>, %arg4: memref<1x32x32xbf16, #tpu.memory_space<vmem>>, %arg5: memref<1x32x1xf32, #tpu.memory_space<vmem>>, %arg6: memref<32x384xf32, #tpu.memory_space<vmem>>) attributes {dimension_semantics = [#tpu.dimension_semantics<parallel>], iteration_bounds = array<i64: 1>, scalar_prefetch = 0 : i64, scratch_operands = 0 : i64, tpu.core_type = #tpu.core_type<tc>, window_params = [{transform_indices = @transform_0, window_bounds = array<i64: 32, 384>}, {pipeline_mode = #tpu.pipeline_mode<synchronous>, transform_indices = @transform_1, window_bounds = array<i64: 1, 32, 32>}, {pipeline_mode = #tpu.pipeline_mode<synchronous>, transform_indices = @transform_2, window_bounds = array<i64: 1, 32, 1>}, {pipeline_mode = #tpu.pipeline_mode<synchronous>, transform_indices = @transform_3, window_bounds = array<i64: 1, 32, 32>}, {pipeline_mode = #tpu.pipeline_mode<synchronous>, transform_indices = @transform_4, window_bounds = array<i64: 1, 32, 1>}, {transform_indices = @transform_5, window_bounds = array<i64: 32, 384>}]} {
    %c0 = arith.constant 0 : index
    %c0_0 = arith.constant 0 : index
    %0 = vector.load %arg1[%c0, %c0_0] : memref<32x384xf32, #tpu.memory_space<vmem>>, vector<32x384xf32>
    %c0_1 = arith.constant 0 : index
    %c0_2 = arith.constant 0 : index
    %c0_3 = arith.constant 0 : index
    %1 = vector.load %arg2[%c0_1, %c0_2, %c0_3] : memref<1x32x32xbf16, #tpu.memory_space<vmem>>, vector<1x32x32xbf16>
    %2 = vector.shape_cast %1 : vector<1x32x32xbf16> to vector<32x32xbf16>
    %3 = arith.truncf %0 : vector<32x384xf32> to vector<32x384xbf16>
    %cst = arith.constant dense<0.000000e+00> : vector<32x384xf32>
    %4 = tpu.matmul %2, %3, %cst {dimension_numbers = #tpu.dot_dimension_numbers<[1], [0], [0], [1], [0, 0, 1, 1], [], []>} : vector<32x32xbf16>, vector<32x384xbf16>, vector<32x384xf32> -> vector<32x384xf32>
    %c0_4 = arith.constant 0 : index
    %c0_5 = arith.constant 0 : index
    %c0_6 = arith.constant 0 : index
    %5 = vector.load %arg3[%c0_4, %c0_5, %c0_6] : memref<1x32x1xf32, #tpu.memory_space<vmem>>, vector<1x32x1xf32>
    %6 = vector.shape_cast %5 : vector<1x32x1xf32> to vector<32x1xf32>
    %7 = vector.broadcast %6 : vector<32x1xf32> to vector<32x384xf32>
    %8 = arith.addf %4, %7 : vector<32x384xf32>
    %9 = math.absf %8 : vector<32x384xf32>
    %cst_7 = arith.constant 1.000000e+00 : f32
    %10 = vector.broadcast %cst_7 : f32 to vector<32x384xf32>
    %11 = arith.addf %9, %10 : vector<32x384xf32>
    %12 = arith.mulf %8, %11 : vector<32x384xf32>
    %13 = arith.mulf %12, %12 : vector<32x384xf32>
    %cst_8 = arith.constant -5.625000e+03 : f32
    %14 = vector.broadcast %cst_8 : f32 to vector<32x384xf32>
    %15 = arith.mulf %14, %13 : vector<32x384xf32>
    %16 = math.exp %15 : vector<32x384xf32>
    %c0_9 = arith.constant 0 : index
    %c0_10 = arith.constant 0 : index
    %c0_11 = arith.constant 0 : index
    %17 = vector.load %arg4[%c0_9, %c0_10, %c0_11] : memref<1x32x32xbf16, #tpu.memory_space<vmem>>, vector<1x32x32xbf16>
    %18 = vector.shape_cast %17 : vector<1x32x32xbf16> to vector<32x32xbf16>
    %19 = arith.truncf %16 : vector<32x384xf32> to vector<32x384xbf16>
    %cst_12 = arith.constant dense<0.000000e+00> : vector<32x384xf32>
    %20 = tpu.matmul %18, %19, %cst_12 {dimension_numbers = #tpu.dot_dimension_numbers<[1], [0], [0], [1], [0, 0, 1, 1], [], []>} : vector<32x32xbf16>, vector<32x384xbf16>, vector<32x384xf32> -> vector<32x384xf32>
    %c0_13 = arith.constant 0 : index
    %c0_14 = arith.constant 0 : index
    %c0_15 = arith.constant 0 : index
    %21 = vector.load %arg5[%c0_13, %c0_14, %c0_15] : memref<1x32x1xf32, #tpu.memory_space<vmem>>, vector<1x32x1xf32>
    %22 = vector.shape_cast %21 : vector<1x32x1xf32> to vector<32x1xf32>
    %23 = vector.broadcast %22 : vector<32x1xf32> to vector<32x384xf32>
    %24 = arith.addf %20, %23 : vector<32x384xf32>
    %25 = arith.addf %24, %0 : vector<32x384xf32>
    %26 = math.absf %25 : vector<32x384xf32>
    %cst_16 = arith.constant 1.000000e+00 : f32
    %27 = vector.broadcast %cst_16 : f32 to vector<32x384xf32>
    %28 = arith.addf %26, %27 : vector<32x384xf32>
    %29 = arith.mulf %25, %28 : vector<32x384xf32>
    %30 = arith.mulf %29, %29 : vector<32x384xf32>
    %cst_17 = arith.constant -5.625000e+03 : f32
    %31 = vector.broadcast %cst_17 : f32 to vector<32x384xf32>
    %32 = arith.mulf %31, %30 : vector<32x384xf32>
    %33 = math.exp %32 : vector<32x384xf32>
    %c0_18 = arith.constant 0 : index
    %c0_19 = arith.constant 0 : index
    %34 = vector.load %arg6[%c0_18, %c0_19] : memref<32x384xf32, #tpu.memory_space<vmem>>, vector<32x384xf32>
    tpu.vector_store %arg6[%c0_18, %c0_19], %33 {strides = array<i32>} : memref<32x384xf32, #tpu.memory_space<vmem>>, vector<32x384xf32>,
    return
  }
  func.func @transform_0(%arg0: i32) -> (i32, i32) {
    %c0_i32 = arith.constant 0 : i32
    %c0_i32_0 = arith.constant 0 : i32
    return %c0_i32, %arg0 : i32, i32
  }
  func.func @transform_1(%arg0: i32) -> (i32, i32, i32) {
    %c0_i32 = arith.constant 0 : i32
    %c0_i32_0 = arith.constant 0 : i32
    %c0_i32_1 = arith.constant 0 : i32
    %c0_i32_2 = arith.constant 0 : i32
    return %c0_i32, %c0_i32_0, %c0_i32_1 : i32, i32, i32
  }
  func.func @transform_2(%arg0: i32) -> (i32, i32, i32) {
    %c0_i32 = arith.constant 0 : i32
    %c0_i32_0 = arith.constant 0 : i32
    %c0_i32_1 = arith.constant 0 : i32
    %c0_i32_2 = arith.constant 0 : i32
    return %c0_i32, %c0_i32_0, %c0_i32_1 : i32, i32, i32
  }
  func.func @transform_3(%arg0: i32) -> (i32, i32, i32) {
    %c0_i32 = arith.constant 0 : i32
    %c0_i32_0 = arith.constant 0 : i32
    %c0_i32_1 = arith.constant 0 : i32
    %c0_i32_2 = arith.constant 0 : i32
    return %c0_i32, %c0_i32_0, %c0_i32_1 : i32, i32, i32
  }
  func.func @transform_4(%arg0: i32) -> (i32, i32, i32) {
    %c0_i32 = arith.constant 0 : i32
    %c0_i32_0 = arith.constant 0 : i32
    %c0_i32_1 = arith.constant 0 : i32
    %c0_i32_2 = arith.constant 0 : i32
    return %c0_i32, %c0_i32_0, %c0_i32_1 : i32, i32, i32
  }
  func.func @transform_5(%arg0: i32) -> (i32, i32) {
    %c0_i32 = arith.constant 0 : i32
    %c0_i32_0 = arith.constant 0 : i32
    return %c0_i32, %arg0 : i32, i32
  }
}

</mosaic_0001>

<llo_original>
// kernel: tpu_custom_call.1
$region0: #{tpu_custom_call.1}
  #allocation0 [shape = 'u32[]', space=smem, size = 0x4, offset = 0x4, fixed_abs, tag = 'smem constant byte address 0x4 - core index']
  #allocation1 [shape = 'u32[72,128]{1,0:T(1,128)}', space=vmem, size = 0x9000, scoped, tag = 'internal scratch']
  %s0 = inlined_call_operand.hbm [shape: f32[32,300], index: 0, kind: input, shape index: {}]
  %s1 = inlined_call_operand.vmem [shape: bf16[1,32,32], index: 1, kind: input, shape index: {}]
  %s2 = inlined_call_operand.vmem [shape: f32[1,32,1], index: 2, kind: input, shape index: {}]
  %s3 = inlined_call_operand.vmem [shape: bf16[1,32,32], index: 3, kind: input, shape index: {}]
  %s4 = inlined_call_operand.vmem [shape: f32[1,32,1], index: 4, kind: input, shape index: {}]
  %s5 = inlined_call_operand.hbm [shape: f32[32,300], index: 5, kind: output, shape index: {}]
  %s6 = sld [smem:[#allocation0]]
  $region34: #{tpu_custom_call.1} parent=0
    _
  %s8 = ssub.s32 1, %s6
  %s9 = scalar_select 0, %s8, %s6
  $region1: #{tpu_custom_call.1} parent=0
    #allocation2 [shape = 'u8[49152]{0}', space=vmem, size = 0xc000, scoped, tag = 'input window, operand 0, single buffered']
    #allocation3 [shape = 's32[1]{0}', space=sflag, size = 0x4, scoped, tag = 'scoped memory for tpu_custom_call.1']
    #allocation4 [shape = 's32[1]{0}', space=sflag, size = 0x4, scoped, tag = 'scoped memory for tpu_custom_call.1']
    #allocation5 [shape = 'u8[49152]{0}', space=vmem, size = 0xc000, scoped, tag = 'output window, operand 0, single buffered']
    %10 = vsyncpa [#allocation3], 0
    %11 = vsyncpa [#allocation4], 0
    // Predicated region
    $region2: #{tpu_custom_call.1} parent=1 // pred_check
      _
    $region3: #{tpu_custom_call.1} parent=1 // pred_check_branch
      %13 = sbr.rel (0) target = $region5
    $region4: #{tpu_custom_call.1} parent=1 // pred_region
      %15 = vsyncadd [#allocation3], 0
      %s16 = sshll.u32 %s0, 4
      %s17 = int_to_ptr.hbm [resolvable:$true] %s16
      %s18 = sshll.u32 [#allocation2], 4
      %s19 = int_to_ptr.vmem [resolvable:$true] %s18
      %24 = dma.hbm_to_vmem [thread:$0]  %s17, 1536, %s19, [#allocation3], 384, 384, 24
    $region5: #{tpu_custom_call.1} parent=1 // pred_fallthru
      _
    // Predicated region
    $region6: #{tpu_custom_call.1} parent=1 // pred_check
      _
    $region7: #{tpu_custom_call.1} parent=1 // pred_check_branch
      %26 = sbr.rel (0) target = $region9
    $region8: #{tpu_custom_call.1} parent=1 // pred_region
      _
    $region9: #{tpu_custom_call.1} parent=1 // pred_fallthru
      _
    // Predicated region
    $region10: #{tpu_custom_call.1} parent=1 // pred_check
      _
    $region11: #{tpu_custom_call.1} parent=1 // pred_check_branch
      %28 = sbr.rel (0) target = $region13
    $region12: #{tpu_custom_call.1} parent=1 // pred_region
      _
    $region13: #{tpu_custom_call.1} parent=1 // pred_fallthru
      _
    // Predicated region
    $region14: #{tpu_custom_call.1} parent=1 // pred_check
      _
    $region15: #{tpu_custom_call.1} parent=1 // pred_check_branch
      %30 = sbr.rel (0) target = $region17
    $region16: #{tpu_custom_call.1} parent=1 // pred_region
      _
    $region17: #{tpu_custom_call.1} parent=1 // pred_fallthru
      _
    // Predicated region
    $region18: #{tpu_custom_call.1} parent=1 // pred_check
      _
    $region19: #{tpu_custom_call.1} parent=1 // pred_check_branch
      %32 = sbr.rel (0) target = $region21
    $region20: #{tpu_custom_call.1} parent=1 // pred_region
      _
    $region21: #{tpu_custom_call.1} parent=1 // pred_fallthru
      _
    // Predicated region
    $region22: #{tpu_custom_call.1} parent=1 // pred_check
      _
    $region23: #{tpu_custom_call.1} parent=1 // pred_check_branch
      %34 = sbr.rel (0) target = $region25
    $region24: #{tpu_custom_call.1} parent=1 // pred_region
      %36 = dma.done [#allocation3], 1536
    $region25: #{tpu_custom_call.1} parent=1 // pred_fallthru
      _
    %v38 = vld [vmem:[#allocation2] sm:$0xff]
    %v39 = vld [vmem:[#allocation2 + $0x8] sm:$0xff]
    %v40 = vld [vmem:[#allocation2 + $0x10] sm:$0xff]
    %v41 = vld [vmem:[#allocation2 + $0x18] sm:$0xff]
    %v42 = vld [vmem:[#allocation2 + $0x20] sm:$0xff]
    %v43 = vld [vmem:[#allocation2 + $0x28] sm:$0xff]
    %v44 = vld [vmem:[#allocation2 + $0x30] sm:$0xff]
    %v45 = vld [vmem:[#allocation2 + $0x38] sm:$0xff]
    %v46 = vld [vmem:[#allocation2 + $0x40] sm:$0xff]
    %v47 = vld [vmem:[#allocation2 + $0x48] sm:$0xff]
    %v48 = vld [vmem:[#allocation2 + $0x50] sm:$0xff]
    %v49 = vld [vmem:[#allocation2 + $0x58] sm:$0xff]
    %v50 = vld [vmem:[%s1] sm:$0xf]
    %v51 = vld [vmem:[%s1 + $0x4] sm:$0xf]
    %v52 = vld [vmem:[%s1 + $0x8] sm:$0xf]
    %v53 = vld [vmem:[%s1 + $0xc] sm:$0xf]
    %v54 = vpack.c.bf16 %v41, %v38
    %v55 = vpack.c.bf16 %v42, %v39
    %v56 = vpack.c.bf16 %v43, %v40
    %v57 = vpack.c.bf16 %v47, %v44
    %v58 = vpack.c.bf16 %v48, %v45
    %v59 = vpack.c.bf16 %v49, %v46
    %v60 = vld [vmem:[%s2] sm:$0xff]
    %v61 = vld [vmem:[%s2 + $0x8] sm:$0xff]
    %v62 = vld [vmem:[%s2 + $0x10] sm:$0xff]
    %v63 = vld [vmem:[%s2 + $0x18] sm:$0xff]
    %65 = vset.pattern.permute.xlu0 0
    %66 = vperm.xlu0 %65, %v60
    %v67 = vpop.permute.xlu0 %66
    %70 = vset.pattern.permute.xlu0 0
    %71 = vperm.xlu0 %70, %v61
    %v72 = vpop.permute.xlu0 %71
    %75 = vset.pattern.permute.xlu0 0
    %76 = vperm.xlu0 %75, %v62
    %v77 = vpop.permute.xlu0 %76
    %80 = vset.pattern.permute.xlu0 0
    %81 = vperm.xlu0 %80, %v63
    %v82 = vpop.permute.xlu0 %81
    %v88 = vunpack.c.l.b16 %v50
    %v89 = vunpack.c.l.b16 %v51
    %v90 = vunpack.c.l.b16 %v52
    %v91 = vunpack.c.l.b16 %v53
    %v92 = vpack.c.b16 %v89, %v88
    %v93 = vpack.c.b16 %v91, %v90
    %vm94 = vcmask 261120
    %v96 = vsel %vm94, %v92, 0
    %v99 = vsel %vm94, %v93, 0
    %101 = vmatpush.bf16.msra.mxu0 0
    %102 = vmatpush.bf16.msra.mxu0 0
    %103 = vmatpush.bf16.msra.mxu0 0
    %104 = vmatpush.bf16.msra.mxu0 0
    %105 = vmatpush.bf16.msra.mxu0 0
    %106 = vmatpush.bf16.msra.mxu0 0
    %107 = vmatpush.bf16.msra.mxu0 %v57
    %108 = vmatpush.bf16.msra.mxu0 %v54
    %109 = vmatmul.bf16.gmra.mxu0 %v96
    %v110 = vpop.f32.mrf.mxu0
    %v111 = vadd.f32 %v67, %v110
    %v112 = vpop.f32.mrf.mxu0
    %v113 = vadd.f32 %v72, %v112
    %114 = vmatmul.bf16.gmra.mxu0 %v99
    %v115 = vpop.f32.mrf.mxu0
    %v116 = vadd.f32 %v77, %v115
    %v117 = vpop.f32.mrf.mxu0
    %v118 = vadd.f32 %v82, %v117
    %119 = vdwg.mxu0
    %120 = vmatpush.bf16.msra.mxu0 0
    %121 = vmatpush.bf16.msra.mxu0 0
    %122 = vmatpush.bf16.msra.mxu0 0
    %123 = vmatpush.bf16.msra.mxu0 0
    %124 = vmatpush.bf16.msra.mxu0 0
    %125 = vmatpush.bf16.msra.mxu0 0
    %126 = vmatpush.bf16.msra.mxu0 %v58
    %127 = vmatpush.bf16.msra.mxu0 %v55
    %128 = vmatmul.bf16.gmra.mxu0 %v96
    %v129 = vpop.f32.mrf.mxu0
    %v130 = vadd.f32 %v67, %v129
    %v131 = vpop.f32.mrf.mxu0
    %v132 = vadd.f32 %v72, %v131
    %133 = vmatmul.bf16.gmra.mxu0 %v99
    %v134 = vpop.f32.mrf.mxu0
    %v135 = vadd.f32 %v77, %v134
    %v136 = vpop.f32.mrf.mxu0
    %v137 = vadd.f32 %v82, %v136
    %138 = vdwg.mxu0
    %139 = vmatpush.bf16.msra.mxu0 0
    %140 = vmatpush.bf16.msra.mxu0 0
    %141 = vmatpush.bf16.msra.mxu0 0
    %142 = vmatpush.bf16.msra.mxu0 0
    %143 = vmatpush.bf16.msra.mxu0 0
    %144 = vmatpush.bf16.msra.mxu0 0
    %145 = vmatpush.bf16.msra.mxu0 %v59
    %146 = vmatpush.bf16.msra.mxu0 %v56
    %147 = vmatmul.bf16.gmra.mxu0 %v96
    %v148 = vpop.f32.mrf.mxu0
    %v149 = vadd.f32 %v67, %v148
    %v150 = vpop.f32.mrf.mxu0
    %v151 = vadd.f32 %v72, %v150
    %152 = vmatmul.bf16.gmra.mxu0 %v99
    %v153 = vpop.f32.mrf.mxu0
    %v154 = vadd.f32 %v77, %v153
    %v155 = vpop.f32.mrf.mxu0
    %v156 = vadd.f32 %v82, %v155
    %157 = vdwg.mxu0
    %v158 = vand.u32 2147483647, %v111
    %v159 = vand.u32 2147483647, %v130
    %v160 = vand.u32 2147483647, %v149
    %v161 = vand.u32 2147483647, %v113
    %v162 = vand.u32 2147483647, %v132
    %v163 = vand.u32 2147483647, %v151
    %v164 = vand.u32 2147483647, %v116
    %v165 = vand.u32 2147483647, %v135
    %v166 = vand.u32 2147483647, %v154
    %v167 = vand.u32 2147483647, %v118
    %v168 = vand.u32 2147483647, %v137
    %v169 = vand.u32 2147483647, %v156
    %v170 = vadd.f32 %v158, 1.0
    %v171 = vadd.f32 %v159, 1.0
    %v172 = vadd.f32 %v160, 1.0
    %v173 = vadd.f32 %v161, 1.0
    %v174 = vadd.f32 %v162, 1.0
    %v175 = vadd.f32 %v163, 1.0
    %v176 = vadd.f32 %v164, 1.0
    %v177 = vadd.f32 %v165, 1.0
    %v178 = vadd.f32 %v166, 1.0
    %v179 = vadd.f32 %v167, 1.0
    %v180 = vadd.f32 %v168, 1.0
    %v181 = vadd.f32 %v169, 1.0
    %v182 = vmul.f32 %v111, %v170
    %v183 = vmul.f32 %v130, %v171
    %v184 = vmul.f32 %v149, %v172
    %v185 = vmul.f32 %v113, %v173
    %v186 = vmul.f32 %v132, %v174
    %v187 = vmul.f32 %v151, %v175
    %v188 = vmul.f32 %v116, %v176
    %v189 = vmul.f32 %v135, %v177
    %v190 = vmul.f32 %v154, %v178
    %v191 = vmul.f32 %v118, %v179
    %v192 = vmul.f32 %v137, %v180
    %v193 = vmul.f32 %v156, %v181
    %v194 = vmul.f32 %v182, %v182
    %v195 = vmul.f32 %v183, %v183
    %v196 = vmul.f32 %v184, %v184
    %v197 = vmul.f32 %v185, %v185
    %v198 = vmul.f32 %v186, %v186
    %v199 = vmul.f32 %v187, %v187
    %v200 = vmul.f32 %v188, %v188
    %v201 = vmul.f32 %v189, %v189
    %v202 = vmul.f32 %v190, %v190
    %v203 = vmul.f32 %v191, %v191
    %v204 = vmul.f32 %v192, %v192
    %v205 = vmul.f32 %v193, %v193
    %v206 = vmul.f32 %v194, -5625.0
    %v207 = vmul.f32 %v195, -5625.0
    %v208 = vmul.f32 %v196, -5625.0
    %v209 = vmul.f32 %v197, -5625.0
    %v210 = vmul.f32 %v198, -5625.0
    %v211 = vmul.f32 %v199, -5625.0
    %v212 = vmul.f32 %v200, -5625.0
    %v213 = vmul.f32 %v201, -5625.0
    %v214 = vmul.f32 %v202, -5625.0
    %v215 = vmul.f32 %v203, -5625.0
    %v216 = vmul.f32 %v204, -5625.0
    %v217 = vmul.f32 %v205, -5625.0
    %v218 = vmul.f32 %v206, 1.442695
    %v219 = vpow.pop %v218
    %v220 = vmul.f32 %v207, 1.442695
    %v221 = vpow.pop %v220
    %v222 = vmul.f32 %v208, 1.442695
    %v223 = vpow.pop %v222
    %v224 = vmul.f32 %v209, 1.442695
    %v225 = vpow.pop %v224
    %v226 = vmul.f32 %v210, 1.442695
    %v227 = vpow.pop %v226
    %v228 = vmul.f32 %v211, 1.442695
    %v229 = vpow.pop %v228
    %v230 = vmul.f32 %v212, 1.442695
    %v231 = vpow.pop %v230
    %v232 = vmul.f32 %v213, 1.442695
    %v233 = vpow.pop %v232
    %v234 = vmul.f32 %v214, 1.442695
    %v235 = vpow.pop %v234
    %v236 = vmul.f32 %v215, 1.442695
    %v237 = vpow.pop %v236
    %v238 = vmul.f32 %v216, 1.442695
    %v239 = vpow.pop %v238
    %v240 = vmul.f32 %v217, 1.442695
    %v241 = vpow.pop %v240
    %v242 = vld [vmem:[%s3] sm:$0xf]
    %v243 = vld [vmem:[%s3 + $0x4] sm:$0xf]
    %v244 = vld [vmem:[%s3 + $0x8] sm:$0xf]
    %v245 = vld [vmem:[%s3 + $0xc] sm:$0xf]
    %v246 = vpack.c.bf16 %v225, %v219
    %v247 = vpack.c.bf16 %v227, %v221
    %v248 = vpack.c.bf16 %v229, %v223
    %v249 = vpack.c.bf16 %v237, %v231
    %v250 = vpack.c.bf16 %v239, %v233
    %v251 = vpack.c.bf16 %v241, %v235
    %v252 = vld [vmem:[%s4] sm:$0xff]
    %v253 = vld [vmem:[%s4 + $0x8] sm:$0xff]
    %v254 = vld [vmem:[%s4 + $0x10] sm:$0xff]
    %v255 = vld [vmem:[%s4 + $0x18] sm:$0xff]
    %257 = vset.pattern.permute.xlu0 0
    %258 = vperm.xlu0 %257, %v252
    %v259 = vpop.permute.xlu0 %258
    %262 = vset.pattern.permute.xlu0 0
    %263 = vperm.xlu0 %262, %v253
    %v264 = vpop.permute.xlu0 %263
    %267 = vset.pattern.permute.xlu0 0
    %268 = vperm.xlu0 %267, %v254
    %v269 = vpop.permute.xlu0 %268
    %272 = vset.pattern.permute.xlu0 0
    %273 = vperm.xlu0 %272, %v255
    %v274 = vpop.permute.xlu0 %273
    %v280 = vunpack.c.l.b16 %v242
    %v281 = vunpack.c.l.b16 %v243
    %v282 = vunpack.c.l.b16 %v244
    %v283 = vunpack.c.l.b16 %v245
    %v284 = vpack.c.b16 %v281, %v280
    %v285 = vpack.c.b16 %v283, %v282
    %v287 = vsel %vm94, %v284, 0
    %v290 = vsel %vm94, %v285, 0
    %292 = vmatpush.bf16.msra.mxu0 0
    %293 = vmatpush.bf16.msra.mxu0 0
    %294 = vmatpush.bf16.msra.mxu0 0
    %295 = vmatpush.bf16.msra.mxu0 0
    %296 = vmatpush.bf16.msra.mxu0 0
    %297 = vmatpush.bf16.msra.mxu0 0
    %298 = vmatpush.bf16.msra.mxu0 %v249
    %299 = vmatpush.bf16.msra.mxu0 %v246
    %300 = vmatmul.bf16.gmra.mxu0 %v287
    %v301 = vpop.f32.mrf.mxu0
    %v302 = vadd.f32 %v259, %v301
    %v303 = vpop.f32.mrf.mxu0
    %v304 = vadd.f32 %v264, %v303
    %305 = vmatmul.bf16.gmra.mxu0 %v290
    %v306 = vpop.f32.mrf.mxu0
    %v307 = vadd.f32 %v269, %v306
    %v308 = vpop.f32.mrf.mxu0
    %v309 = vadd.f32 %v274, %v308
    %310 = vdwg.mxu0
    %311 = vmatpush.bf16.msra.mxu0 0
    %312 = vmatpush.bf16.msra.mxu0 0
    %313 = vmatpush.bf16.msra.mxu0 0
    %314 = vmatpush.bf16.msra.mxu0 0
    %315 = vmatpush.bf16.msra.mxu0 0
    %316 = vmatpush.bf16.msra.mxu0 0
    %317 = vmatpush.bf16.msra.mxu0 %v250
    %318 = vmatpush.bf16.msra.mxu0 %v247
    %319 = vmatmul.bf16.gmra.mxu0 %v287
    %v320 = vpop.f32.mrf.mxu0
    %v321 = vadd.f32 %v259, %v320
    %v322 = vpop.f32.mrf.mxu0
    %v323 = vadd.f32 %v264, %v322
    %324 = vmatmul.bf16.gmra.mxu0 %v290
    %v325 = vpop.f32.mrf.mxu0
    %v326 = vadd.f32 %v269, %v325
    %v327 = vpop.f32.mrf.mxu0
    %v328 = vadd.f32 %v274, %v327
    %329 = vdwg.mxu0
    %330 = vmatpush.bf16.msra.mxu0 0
    %331 = vmatpush.bf16.msra.mxu0 0
    %332 = vmatpush.bf16.msra.mxu0 0
    %333 = vmatpush.bf16.msra.mxu0 0
    %334 = vmatpush.bf16.msra.mxu0 0
    %335 = vmatpush.bf16.msra.mxu0 0
    %336 = vmatpush.bf16.msra.mxu0 %v251
    %337 = vmatpush.bf16.msra.mxu0 %v248
    %338 = vmatmul.bf16.gmra.mxu0 %v287
    %v339 = vpop.f32.mrf.mxu0
    %v340 = vadd.f32 %v259, %v339
    %v341 = vpop.f32.mrf.mxu0
    %v342 = vadd.f32 %v264, %v341
    %343 = vmatmul.bf16.gmra.mxu0 %v290
    %v344 = vpop.f32.mrf.mxu0
    %v345 = vadd.f32 %v269, %v344
    %v346 = vpop.f32.mrf.mxu0
    %v347 = vadd.f32 %v274, %v346
    %348 = vdwg.mxu0
    %v349 = vadd.f32 %v302, %v38
    %v350 = vadd.f32 %v321, %v39
    %v351 = vadd.f32 %v340, %v40
    %v352 = vadd.f32 %v304, %v41
    %v353 = vadd.f32 %v323, %v42
    %v354 = vadd.f32 %v342, %v43
    %v355 = vadd.f32 %v307, %v44
    %v356 = vadd.f32 %v326, %v45
    %v357 = vadd.f32 %v345, %v46
    %v358 = vadd.f32 %v309, %v47
    %v359 = vadd.f32 %v328, %v48
    %v360 = vadd.f32 %v347, %v49
    %v361 = vand.u32 2147483647, %v349
    %v362 = vand.u32 2147483647, %v350
    %v363 = vand.u32 2147483647, %v351
    %v364 = vand.u32 2147483647, %v352
    %v365 = vand.u32 2147483647, %v353
    %v366 = vand.u32 2147483647, %v354
    %v367 = vand.u32 2147483647, %v355
    %v368 = vand.u32 2147483647, %v356
    %v369 = vand.u32 2147483647, %v357
    %v370 = vand.u32 2147483647, %v358
    %v371 = vand.u32 2147483647, %v359
    %v372 = vand.u32 2147483647, %v360
    %v373 = vadd.f32 %v361, 1.0
    %v374 = vadd.f32 %v362, 1.0
    %v375 = vadd.f32 %v363, 1.0
    %v376 = vadd.f32 %v364, 1.0
    %v377 = vadd.f32 %v365, 1.0
    %v378 = vadd.f32 %v366, 1.0
    %v379 = vadd.f32 %v367, 1.0
    %v380 = vadd.f32 %v368, 1.0
    %v381 = vadd.f32 %v369, 1.0
    %v382 = vadd.f32 %v370, 1.0
    %v383 = vadd.f32 %v371, 1.0
    %v384 = vadd.f32 %v372, 1.0
    %v385 = vmul.f32 %v349, %v373
    %v386 = vmul.f32 %v350, %v374
    %v387 = vmul.f32 %v351, %v375
    %v388 = vmul.f32 %v352, %v376
    %v389 = vmul.f32 %v353, %v377
    %v390 = vmul.f32 %v354, %v378
    %v391 = vmul.f32 %v355, %v379
    %v392 = vmul.f32 %v356, %v380
    %v393 = vmul.f32 %v357, %v381
    %v394 = vmul.f32 %v358, %v382
    %v395 = vmul.f32 %v359, %v383
    %v396 = vmul.f32 %v360, %v384
    %v397 = vmul.f32 %v385, %v385
    %v398 = vmul.f32 %v386, %v386
    %v399 = vmul.f32 %v387, %v387
    %v400 = vmul.f32 %v388, %v388
    %v401 = vmul.f32 %v389, %v389
    %v402 = vmul.f32 %v390, %v390
    %v403 = vmul.f32 %v391, %v391
    %v404 = vmul.f32 %v392, %v392
    %v405 = vmul.f32 %v393, %v393
    %v406 = vmul.f32 %v394, %v394
    %v407 = vmul.f32 %v395, %v395
    %v408 = vmul.f32 %v396, %v396
    %v409 = vmul.f32 %v397, -5625.0
    %v410 = vmul.f32 %v398, -5625.0
    %v411 = vmul.f32 %v399, -5625.0
    %v412 = vmul.f32 %v400, -5625.0
    %v413 = vmul.f32 %v401, -5625.0
    %v414 = vmul.f32 %v402, -5625.0
    %v415 = vmul.f32 %v403, -5625.0
    %v416 = vmul.f32 %v404, -5625.0
    %v417 = vmul.f32 %v405, -5625.0
    %v418 = vmul.f32 %v406, -5625.0
    %v419 = vmul.f32 %v407, -5625.0
    %v420 = vmul.f32 %v408, -5625.0
    %v421 = vmul.f32 %v409, 1.442695
    %v422 = vpow.pop %v421
    %v423 = vmul.f32 %v410, 1.442695
    %v424 = vpow.pop %v423
    %v425 = vmul.f32 %v411, 1.442695
    %v426 = vpow.pop %v425
    %v427 = vmul.f32 %v412, 1.442695
    %v428 = vpow.pop %v427
    %v429 = vmul.f32 %v413, 1.442695
    %v430 = vpow.pop %v429
    %v431 = vmul.f32 %v414, 1.442695
    %v432 = vpow.pop %v431
    %v433 = vmul.f32 %v415, 1.442695
    %v434 = vpow.pop %v433
    %v435 = vmul.f32 %v416, 1.442695
    %v436 = vpow.pop %v435
    %v437 = vmul.f32 %v417, 1.442695
    %v438 = vpow.pop %v437
    %v439 = vmul.f32 %v418, 1.442695
    %v440 = vpow.pop %v439
    %v441 = vmul.f32 %v419, 1.442695
    %v442 = vpow.pop %v441
    %v443 = vmul.f32 %v420, 1.442695
    %v444 = vpow.pop %v443
    %445 = vst [vmem:[#allocation5] sm:$0xff] %v422
    %446 = vst [vmem:[#allocation5 + $0x8] sm:$0xff] %v424
    %447 = vst [vmem:[#allocation5 + $0x10] sm:$0xff] %v426
    %448 = vst [vmem:[#allocation5 + $0x18] sm:$0xff] %v428
    %449 = vst [vmem:[#allocation5 + $0x20] sm:$0xff] %v430
    %450 = vst [vmem:[#allocation5 + $0x28] sm:$0xff] %v432
    %451 = vst [vmem:[#allocation5 + $0x30] sm:$0xff] %v434
    %452 = vst [vmem:[#allocation5 + $0x38] sm:$0xff] %v436
    %453 = vst [vmem:[#allocation5 + $0x40] sm:$0xff] %v438
    %454 = vst [vmem:[#allocation5 + $0x48] sm:$0xff] %v440
    %455 = vst [vmem:[#allocation5 + $0x50] sm:$0xff] %v442
    %456 = vst [vmem:[#allocation5 + $0x58] sm:$0xff] %v444
    // Predicated region
    $region26: #{tpu_custom_call.1} parent=1 // pred_check
      _
    $region27: #{tpu_custom_call.1} parent=1 // pred_check_branch
      %458 = sbr.rel (0) target = $region29
    $region28: #{tpu_custom_call.1} parent=1 // pred_region
      %460 = vsyncadd [#allocation4], 0
      %s461 = sshll.u32 [#allocation5], 4
      %s462 = int_to_ptr.vmem [resolvable:$true] %s461
      %s463 = sshll.u32 %s5, 4
      %s464 = int_to_ptr.hbm [resolvable:$true] %s463
      %469 = dma.vmem_to_hbm [thread:$0]  %s462, 1536, %s464, [#allocation4], 384, 384, 24
    $region29: #{tpu_custom_call.1} parent=1 // pred_fallthru
      _
    // Predicated region
    $region30: #{tpu_custom_call.1} parent=1 // pred_check
      _
    $region31: #{tpu_custom_call.1} parent=1 // pred_check_branch
      %471 = sbr.rel (0) target = $region33
    $region32: #{tpu_custom_call.1} parent=1 // pred_region
      %473 = dma.done [#allocation4], 1536
    $region33: #{tpu_custom_call.1} parent=1 // pred_fallthru
      _
    %474 = vsyncpa [#allocation3], 1
    %475 = vsyncpa [#allocation4], 1

</llo_original>
